<compile_context>
chip_gen: v6e
topology: v6e:2x2x1
jax: 0.10.0
libtpu: 0.0.40
codegen_flags: <defaults>
</compile_context>

<pallas_src>
import functools

import jax
import jax.numpy as jnp
from jax.experimental import pallas as pl
from jax.experimental.pallas import tpu as pltpu


# ----------------------------------------------------------------------------
# Pallas kernel: one LSTM layer.  Grid = (batch blocks, time chunks); each
# invocation runs Tt timesteps with an unrolled fori_loop.  h/c state lives in
# f32 VMEM scratch and is carried across the (sequential) time-chunk axis.
# ----------------------------------------------------------------------------
def _lstm_layer_kernel(*refs, rate, has_dropout):
    if has_dropout:
        (gx_ref, w_hh_ref, h0_ref, c0_ref, bits_ref,
         y_ref, hT_ref, cT_ref, h_scr, c_scr) = refs
    else:
        (gx_ref, w_hh_ref, h0_ref, c0_ref,
         y_ref, hT_ref, cT_ref, h_scr, c_scr) = refs
        bits_ref = None

    t_chunk = pl.program_id(1)
    n_chunks = pl.num_programs(1)
    Tt = gx_ref.shape[0]
    H = h_scr.shape[-1]

    @pl.when(t_chunk == 0)
    def _():
        # Explicit casts: inputs may be f32/bf16, the carried state is f32.
        h_scr[...] = h0_ref[...].astype(jnp.float32)
        c_scr[...] = c0_ref[...].astype(jnp.float32)

    w_hh = w_hh_ref[...]                       # (H, 4H), bf16

    if has_dropout:
        thresh = jnp.uint32(min(int(rate * (2 ** 32)), 2 ** 32 - 1))
        scale = jnp.float32(1.0 / (1.0 - rate))

    def step(t, carry):
        h_prev, c_prev = carry                 # f32 (Bb, H)
        # Pre-gates gx already hold x_t @ W_ih + b (f32); only the recurrent
        # matmul remains: bf16 operands, f32 accumulation on the MXU.
        gates = gx_ref[t] + jnp.dot(h_prev.astype(w_hh.dtype), w_hh,
                                    preferred_element_type=jnp.float32)
        i_g = jax.nn.sigmoid(gates[:, 0 * H:1 * H])
        f_g = jax.nn.sigmoid(gates[:, 1 * H:2 * H])
        g_g = jnp.tanh(gates[:, 2 * H:3 * H])
        o_g = jax.nn.sigmoid(gates[:, 3 * H:4 * H])
        c_new = f_g * c_prev + i_g * g_g
        h_new = o_g * jnp.tanh(c_new)

        if has_dropout:
            # Integer-domain keep decision: P(keep) = 1 - rate.
            keep = bits_ref[t] >= thresh
            h_out = jnp.where(keep, h_new * scale, jnp.float32(0.0))
        else:
            h_out = h_new
        y_ref[t] = h_out.astype(y_ref.dtype)   # VMEM write; HBM writeback is
        return (h_new, c_new)                  # one (Tt, Bb, H) tile / chunk.

    h_fin, c_fin = jax.lax.fori_loop(
        0, Tt, step, (h_scr[...], c_scr[...]), unroll=True)
    h_scr[...] = h_fin
    c_scr[...] = c_fin

    @pl.when(t_chunk == n_chunks - 1)
    def _():
        # Final (non-dropped) hidden/cell state for this batch block.
        hT_ref[...] = h_fin.astype(hT_ref.dtype)
        cT_ref[...] = c_fin.astype(cT_ref.dtype)


def lstm_layer_pallas(gx, w_hh_t, h0, c0, *, out_dtype=None, drop_bits=None,
                      drop_rate=0.0, time_block=None, batch_block=None):
    """One LSTM layer.

    gx:      (T, B, 4H) f32 pre-gates  (x @ W_ih + b_ih + b_hh, precomputed)
    w_hh_t:  (H, 4H)    bf16 recurrent weights (pre-transposed)
    h0, c0:  (B, H)     initial state
    drop_bits: optional (T, B, H) uint32 random bits for fused dropout.
    """
    T, B, G = gx.shape
    H = w_hh_t.shape[0]
    assert G == 4 * H
    out_dtype = out_dtype or h0.dtype
    has_dropout = (drop_bits is not None) and (drop_rate > 0.0)

    if time_block is None:
        Tt = T
        for cand in (16, 8, 4, 2, 1):
            if cand <= T and T % cand == 0:
                Tt = cand
                break
    else:
        Tt = time_block
    Bb = batch_block or B
    assert T % Tt == 0 and B % Bb == 0

    grid = (B // Bb, T // Tt)   # (parallel batch blocks, sequential time)

    in_specs = [
        pl.BlockSpec((Tt, Bb, 4 * H), lambda b, t: (t, b, 0)),   # gx
        pl.BlockSpec((H, 4 * H), lambda b, t: (0, 0)),           # w_hh (const)
        pl.BlockSpec((Bb, H), lambda b, t: (b, 0)),              # h0
        pl.BlockSpec((Bb, H), lambda b, t: (b, 0)),              # c0
    ]
    args = [gx, w_hh_t, h0, c0]
    if has_dropout:
        in_specs.append(pl.BlockSpec((Tt, Bb, H), lambda b, t: (t, b, 0)))
        args.append(drop_bits)

    out_specs = [
        pl.BlockSpec((Tt, Bb, H), lambda b, t: (t, b, 0)),       # y
        pl.BlockSpec((Bb, H), lambda b, t: (b, 0)),              # h_T
        pl.BlockSpec((Bb, H), lambda b, t: (b, 0)),              # c_T
    ]

    grid_spec = pltpu.PrefetchScalarGridSpec(
        num_scalar_prefetch=0,
        grid=grid,
        in_specs=in_specs,
        out_specs=out_specs,
        scratch_shapes=[pltpu.VMEM((Bb, H), jnp.float32),
                        pltpu.VMEM((Bb, H), jnp.float32)],
    )

    kernel = functools.partial(_lstm_layer_kernel, rate=float(drop_rate),
                               has_dropout=has_dropout)
    y, hT, cT = pl.pallas_call(
        kernel,
        out_shape=(jax.ShapeDtypeStruct((T, B, H), out_dtype),
                   jax.ShapeDtypeStruct((B, H), out_dtype),
                   jax.ShapeDtypeStruct((B, H), out_dtype)),
        grid_spec=grid_spec,
        compiler_params=pltpu.CompilerParams(
            dimension_semantics=("parallel", "arbitrary"),
            vmem_limit_bytes=64 * 1024 * 1024),
    )(*args)
    return y, hT, cT


# ----------------------------------------------------------------------------
# LstmDrop module equivalent (parameter init + forward orchestration).
# ----------------------------------------------------------------------------
def init_lstm_drop_params(key, input_size, hidden_size, num_layers,
                          forget_gate_bias):
    """torch.nn.LSTM-style init: U(-1/sqrt(H), 1/sqrt(H)); then
    bias_ih[H:2H] = forget_gate_bias, bias_hh[H:2H] = 0.
    Weights are stored pre-transposed and cast to bf16 for the MXU."""
    H = hidden_size
    stdv = 1.0 / jnp.sqrt(jnp.float32(H))
    params = []
    for layer in range(num_layers):
        D_l = input_size if layer == 0 else hidden_size
        key, k1, k2, k3, k4 = jax.random.split(key, 5)
        w_ih = jax.random.uniform(k1, (4 * H, D_l), jnp.float32, -stdv, stdv)
        w_hh = jax.random.uniform(k2, (4 * H, H), jnp.float32, -stdv, stdv)
        b_ih = jax.random.uniform(k3, (4 * H,), jnp.float32, -stdv, stdv)
        b_hh = jax.random.uniform(k4, (4 * H,), jnp.float32, -stdv, stdv)
        if forget_gate_bias is not None:
            b_ih = b_ih.at[H:2 * H].set(forget_gate_bias)
            b_hh = b_hh.at[H:2 * H].set(0.0)
        params.append({
            "w_ih_t": jnp.transpose(w_ih).astype(jnp.bfloat16),   # (D_l, 4H)
            "w_hh_t": jnp.transpose(w_hh).astype(jnp.bfloat16),   # (H,   4H)
            "b": (b_ih + b_hh).reshape(1, 4 * H),                 # (1,   4H) f32
        })
    return params


def lstm_drop_forward(params, x, h=None, *, dropout=0.0, training=False,
                      dropout_seed=0, time_block=None):
    """Equivalent of LstmDrop.forward. Returns (y, (h_n, c_n))."""
    num_layers = len(params)
    T, B, _ = x.shape
    H = params[0]["w_hh_t"].shape[0]
    dtype = x.dtype
    if h is None:
        h0 = jnp.zeros((num_layers, B, H), dtype)
        c0 = jnp.zeros((num_layers, B, H), dtype)
    else:
        h0, c0 = h

    # In training: torch.nn.LSTM drops the output of every layer except the
    # last, and the module-level inplace Dropout then drops the final output.
    # Net effect: every layer's output sequence is dropped exactly once, and
    # h_n / c_n are never dropped -- which is what the fused path implements.
    use_drop = bool(dropout) and training
    if use_drop:
        drop_key = jax.random.PRNGKey(dropout_seed)
    # TODO(synk): dropout masks use jax.random bits; they cannot bitwise-match
    # torch's RNG stream (on-chip pltpu PRNG is avoided: no interpret lowering).

    h_n, c_n = [], []
    out = x
    for layer in range(num_layers):
        p = params[layer]
        # Hoisted input projection: one (T*B, D) x (D, 4H) matmul, bf16
        # operands with f32 accumulation, instead of a B-row matmul per step.
        D_l = out.shape[-1]
        gx = jnp.dot(out.reshape(T * B, D_l).astype(jnp.bfloat16),
                     p["w_ih_t"], preferred_element_type=jnp.float32)
        gx = (gx + p["b"]).reshape(T, B, 4 * H)

        if use_drop:
            drop_key, sub = jax.random.split(drop_key)
            bits = jax.random.bits(sub, (T, B, H), dtype=jnp.uint32)
        else:
            bits = None

        out, hT, cT = lstm_layer_pallas(
            gx, p["w_hh_t"], h0[layer], c0[layer],
            out_dtype=dtype, drop_bits=bits,
            drop_rate=float(dropout) if use_drop else 0.0,
            time_block=time_block)
        h_n.append(hT)
        c_n.append(cT)

    return out, (jnp.stack(h_n, axis=0), jnp.stack(c_n, axis=0))


# ----------------------------------------------------------------------------
# Pure-JAX reference (no dropout) that mirrors the kernel's bf16 operand
# rounding, for a tight numerical check of the recurrence.
# ----------------------------------------------------------------------------
def _lstm_ref(params, x, h0, c0):
    H = params[0]["w_hh_t"].shape[0]

    def bf16_round(a):
        return a.astype(jnp.bfloat16).astype(jnp.float32)

    out = x
    for layer, p in enumerate(params):
        w_ih = p["w_ih_t"].astype(jnp.float32)
        w_hh = p["w_hh_t"].astype(jnp.float32)
        b = p["b"]

        def step(carry, x_t, w_ih=w_ih, w_hh=w_hh, b=b):
            h_prev, c_prev = carry
            gates = bf16_round(x_t) @ w_ih + bf16_round(h_prev) @ w_hh + b
            i_g = jax.nn.sigmoid(gates[:, 0 * H:1 * H])
            f_g = jax.nn.sigmoid(gates[:, 1 * H:2 * H])
            g_g = jnp.tanh(gates[:, 2 * H:3 * H])
            o_g = jax.nn.sigmoid(gates[:, 3 * H:4 * H])
            c_new = f_g * c_prev + i_g * g_g
            h_new = o_g * jnp.tanh(c_new)
            return (h_new, c_new), h_new

        (_, _), ys = jax.lax.scan(step, (h0[layer], c0[layer]), out)
        out = ys
    return out


if __name__ == "__main__":
    # Small shapes consistent with the module's forward: (T, B, input_size).
    T, B = 8, 2
    input_size, hidden_size, num_layers = 32, 32, 2
    dropout_p, forget_gate_bias = 0.1, 1.0

    key = jax.random.PRNGKey(0)
    kx, kp = jax.random.split(key)
    x = jax.random.normal(kx, (T, B, input_size), dtype=jnp.float32)
    params = init_lstm_drop_params(kp, input_size, hidden_size, num_layers,
                                   forget_gate_bias)

    # Eval-mode pass (dropout is identity) -> check against pure-JAX reference.
    y_eval, (h_n, c_n) = lstm_drop_forward(params, x, None,
                                           dropout=dropout_p, training=False)
    jax.block_until_ready((y_eval, h_n, c_n))
    zeros = jnp.zeros((num_layers, B, hidden_size), jnp.float32)
    y_ref = _lstm_ref(params, x, zeros, zeros)
    err = float(jnp.max(jnp.abs(y_eval - y_ref)))
    assert err < 2e-2, f"LSTM mismatch vs reference: {err}"

    # Training-mode pass exercises the fused-dropout path.
    y_train, (h_t, c_t) = lstm_drop_forward(params, x, None, dropout=dropout_p,
                                            training=True, dropout_seed=1234)
    jax.block_until_ready((y_train, h_t, c_t))
    assert y_train.shape == (T, B, hidden_size)
    assert float(jnp.max(jnp.abs(y_train - y_eval))) > 1e-4  # dropout applied

    assert y_eval.shape == (T, B, hidden_size)
    assert h_n.shape == (num_layers, B, hidden_size)
    assert c_n.shape == (num_layers, B, hidden_size)
    print("KERNEL_OK")
</pallas_src>

<mosaic_0001>
module attributes {stable_mosaic.version = 11 : i64} {
  func.func @_lstm_layer_kernel(%arg0: i32, %arg1: i32, %arg2: memref<8x2x128xf32, #tpu.memory_space<vmem>>, %arg3: memref<32x128xbf16, #tpu.memory_space<vmem>>, %arg4: memref<2x32xf32, #tpu.memory_space<vmem>>, %arg5: memref<2x32xf32, #tpu.memory_space<vmem>>, %arg6: memref<8x2x32xf32, #tpu.memory_space<vmem>>, %arg7: memref<2x32xf32, #tpu.memory_space<vmem>>, %arg8: memref<2x32xf32, #tpu.memory_space<vmem>>, %arg9: memref<2x32xf32, #tpu.memory_space<vmem>>, %arg10: memref<2x32xf32, #tpu.memory_space<vmem>>) attributes {dimension_semantics = [#tpu.dimension_semantics<parallel>, #tpu.dimension_semantics<arbitrary>], iteration_bounds = array<i64: 1, 1>, scalar_prefetch = 0 : i64, scratch_operands = 2 : i64, tpu.core_type = #tpu.core_type<tc>, window_params = [{transform_indices = @transform_0, window_bounds = array<i64: 8, 2, 128>}, {pipeline_mode = #tpu.pipeline_mode<synchronous>, transform_indices = @transform_1, window_bounds = array<i64: 32, 128>}, {transform_indices = @transform_2, window_bounds = array<i64: 2, 32>}, {transform_indices = @transform_3, window_bounds = array<i64: 2, 32>}, {transform_indices = @transform_4, window_bounds = array<i64: 8, 2, 32>}, {transform_indices = @transform_5, window_bounds = array<i64: 2, 32>}, {transform_indices = @transform_6, window_bounds = array<i64: 2, 32>}]} {
    %c0_i32 = arith.constant 0 : i32
    %0 = arith.cmpi eq, %arg1, %c0_i32 : i32
    %1 = arith.extui %0 : i1 to i32
    %c0_i32_0 = arith.constant 0 : i32
    %2 = arith.cmpi ne, %1, %c0_i32_0 : i32
    scf.if %2 {
      %c0_76 = arith.constant 0 : index
      %c0_77 = arith.constant 0 : index
      %291 = vector.load %arg4[%c0_76, %c0_77] : memref<2x32xf32, #tpu.memory_space<vmem>>, vector<2x32xf32>
      %c0_78 = arith.constant 0 : index
      %c0_79 = arith.constant 0 : index
      %292 = vector.load %arg9[%c0_78, %c0_79] : memref<2x32xf32, #tpu.memory_space<vmem>>, vector<2x32xf32>
      tpu.vector_store %arg9[%c0_78, %c0_79], %291 {strides = array<i32>} : memref<2x32xf32, #tpu.memory_space<vmem>>, vector<2x32xf32>,
      %c0_80 = arith.constant 0 : index
      %c0_81 = arith.constant 0 : index
      %293 = vector.load %arg5[%c0_80, %c0_81] : memref<2x32xf32, #tpu.memory_space<vmem>>, vector<2x32xf32>
      %c0_82 = arith.constant 0 : index
      %c0_83 = arith.constant 0 : index
      %294 = vector.load %arg10[%c0_82, %c0_83] : memref<2x32xf32, #tpu.memory_space<vmem>>, vector<2x32xf32>
      tpu.vector_store %arg10[%c0_82, %c0_83], %293 {strides = array<i32>} : memref<2x32xf32, #tpu.memory_space<vmem>>, vector<2x32xf32>,
    } else {
    }
    %c0 = arith.constant 0 : index
    %c0_1 = arith.constant 0 : index
    %3 = vector.load %arg3[%c0, %c0_1] : memref<32x128xbf16, #tpu.memory_space<vmem>>, vector<32x128xbf16>
    %c0_2 = arith.constant 0 : index
    %c0_3 = arith.constant 0 : index
    %4 = vector.load %arg9[%c0_2, %c0_3] : memref<2x32xf32, #tpu.memory_space<vmem>>, vector<2x32xf32>
    %c0_4 = arith.constant 0 : index
    %c0_5 = arith.constant 0 : index
    %5 = vector.load %arg10[%c0_4, %c0_5] : memref<2x32xf32, #tpu.memory_space<vmem>>, vector<2x32xf32>
    %c0_i32_6 = arith.constant 0 : i32
    %6 = arith.index_cast %c0_i32_6 : i32 to index
    %c0_7 = arith.constant 0 : index
    %c0_8 = arith.constant 0 : index
    %7 = vector.load %arg2[%6, %c0_7, %c0_8] : memref<8x2x128xf32, #tpu.memory_space<vmem>>, vector<1x2x128xf32>
    %8 = vector.shape_cast %7 : vector<1x2x128xf32> to vector<2x128xf32>
    %9 = arith.truncf %4 : vector<2x32xf32> to vector<2x32xbf16>
    %cst = arith.constant dense<0.000000e+00> : vector<2x128xf32>
    %10 = tpu.matmul %9, %3, %cst {dimension_numbers = #tpu.dot_dimension_numbers<[1], [0], [0], [1], [0, 0, 1, 1], [], []>} : vector<2x32xbf16>, vector<32x128xbf16>, vector<2x128xf32> -> vector<2x128xf32>
    %11 = arith.addf %8, %10 : vector<2x128xf32>
    %12 = vector.extract_strided_slice %11 {offsets = [0, 0], sizes = [2, 32], strides = [1, 1]} : vector<2x128xf32> to vector<2x32xf32>
    %13 = arith.negf %12 : vector<2x32xf32>
    %14 = math.exp %13 : vector<2x32xf32>
    %cst_9 = arith.constant 1.000000e+00 : f32
    %15 = vector.broadcast %cst_9 : f32 to vector<2x32xf32>
    %16 = arith.addf %15, %14 : vector<2x32xf32>
    %17 = arith.divf %15, %16 : vector<2x32xf32>
    %18 = vector.extract_strided_slice %11 {offsets = [0, 32], sizes = [2, 32], strides = [1, 1]} : vector<2x128xf32> to vector<2x32xf32>
    %19 = arith.negf %18 : vector<2x32xf32>
    %20 = math.exp %19 : vector<2x32xf32>
    %cst_10 = arith.constant 1.000000e+00 : f32
    %21 = vector.broadcast %cst_10 : f32 to vector<2x32xf32>
    %22 = arith.addf %21, %20 : vector<2x32xf32>
    %23 = arith.divf %21, %22 : vector<2x32xf32>
    %24 = vector.extract_strided_slice %11 {offsets = [0, 64], sizes = [2, 32], strides = [1, 1]} : vector<2x128xf32> to vector<2x32xf32>
    %25 = math.tanh %24 : vector<2x32xf32>
    %26 = vector.extract_strided_slice %11 {offsets = [0, 96], sizes = [2, 32], strides = [1, 1]} : vector<2x128xf32> to vector<2x32xf32>
    %27 = arith.negf %26 : vector<2x32xf32>
    %28 = math.exp %27 : vector<2x32xf32>
    %cst_11 = arith.constant 1.000000e+00 : f32
    %29 = vector.broadcast %cst_11 : f32 to vector<2x32xf32>
    %30 = arith.addf %29, %28 : vector<2x32xf32>
    %31 = arith.divf %29, %30 : vector<2x32xf32>
    %32 = arith.mulf %23, %5 : vector<2x32xf32>
    %33 = arith.mulf %17, %25 : vector<2x32xf32>
    %34 = arith.addf %32, %33 : vector<2x32xf32>
    %35 = math.tanh %34 : vector<2x32xf32>
    %36 = arith.mulf %31, %35 : vector<2x32xf32>
    %37 = arith.index_cast %c0_i32_6 : i32 to index
    %c0_12 = arith.constant 0 : index
    %c0_13 = arith.constant 0 : index
    %38 = vector.load %arg6[%37, %c0_12, %c0_13] : memref<8x2x32xf32, #tpu.memory_space<vmem>>, vector<1x2x32xf32>
    %39 = vector.shape_cast %38 : vector<1x2x32xf32> to vector<2x32xf32>
    %40 = vector.shape_cast %36 : vector<2x32xf32> to vector<1x2x32xf32>
    tpu.vector_store %arg6[%37, %c0_12, %c0_13], %40 {strides = array<i32>} : memref<8x2x32xf32, #tpu.memory_space<vmem>>, vector<1x2x32xf32>,
    %c1_i32 = arith.constant 1 : i32
    %41 = arith.index_cast %c1_i32 : i32 to index
    %c0_14 = arith.constant 0 : index
    %c0_15 = arith.constant 0 : index
    %42 = vector.load %arg2[%41, %c0_14, %c0_15] : memref<8x2x128xf32, #tpu.memory_space<vmem>>, vector<1x2x128xf32>
    %43 = vector.shape_cast %42 : vector<1x2x128xf32> to vector<2x128xf32>
    %44 = arith.truncf %36 : vector<2x32xf32> to vector<2x32xbf16>
    %cst_16 = arith.constant dense<0.000000e+00> : vector<2x128xf32>
    %45 = tpu.matmul %44, %3, %cst_16 {dimension_numbers = #tpu.dot_dimension_numbers<[1], [0], [0], [1], [0, 0, 1, 1], [], []>} : vector<2x32xbf16>, vector<32x128xbf16>, vector<2x128xf32> -> vector<2x128xf32>
    %46 = arith.addf %43, %45 : vector<2x128xf32>
    %47 = vector.extract_strided_slice %46 {offsets = [0, 0], sizes = [2, 32], strides = [1, 1]} : vector<2x128xf32> to vector<2x32xf32>
    %48 = arith.negf %47 : vector<2x32xf32>
    %49 = math.exp %48 : vector<2x32xf32>
    %cst_17 = arith.constant 1.000000e+00 : f32
    %50 = vector.broadcast %cst_17 : f32 to vector<2x32xf32>
    %51 = arith.addf %50, %49 : vector<2x32xf32>
    %52 = arith.divf %50, %51 : vector<2x32xf32>
    %53 = vector.extract_strided_slice %46 {offsets = [0, 32], sizes = [2, 32], strides = [1, 1]} : vector<2x128xf32> to vector<2x32xf32>
    %54 = arith.negf %53 : vector<2x32xf32>
    %55 = math.exp %54 : vector<2x32xf32>
    %cst_18 = arith.constant 1.000000e+00 : f32
    %56 = vector.broadcast %cst_18 : f32 to vector<2x32xf32>
    %57 = arith.addf %56, %55 : vector<2x32xf32>
    %58 = arith.divf %56, %57 : vector<2x32xf32>
    %59 = vector.extract_strided_slice %46 {offsets = [0, 64], sizes = [2, 32], strides = [1, 1]} : vector<2x128xf32> to vector<2x32xf32>
    %60 = math.tanh %59 : vector<2x32xf32>
    %61 = vector.extract_strided_slice %46 {offsets = [0, 96], sizes = [2, 32], strides = [1, 1]} : vector<2x128xf32> to vector<2x32xf32>
    %62 = arith.negf %61 : vector<2x32xf32>
    %63 = math.exp %62 : vector<2x32xf32>
    %cst_19 = arith.constant 1.000000e+00 : f32
    %64 = vector.broadcast %cst_19 : f32 to vector<2x32xf32>
    %65 = arith.addf %64, %63 : vector<2x32xf32>
    %66 = arith.divf %64, %65 : vector<2x32xf32>
    %67 = arith.mulf %58, %34 : vector<2x32xf32>
    %68 = arith.mulf %52, %60 : vector<2x32xf32>
    %69 = arith.addf %67, %68 : vector<2x32xf32>
    %70 = math.tanh %69 : vector<2x32xf32>
    %71 = arith.mulf %66, %70 : vector<2x32xf32>
    %72 = arith.index_cast %c1_i32 : i32 to index
    %c0_20 = arith.constant 0 : index
    %c0_21 = arith.constant 0 : index
    %73 = vector.load %arg6[%72, %c0_20, %c0_21] : memref<8x2x32xf32, #tpu.memory_space<vmem>>, vector<1x2x32xf32>
    %74 = vector.shape_cast %73 : vector<1x2x32xf32> to vector<2x32xf32>
    %75 = vector.shape_cast %71 : vector<2x32xf32> to vector<1x2x32xf32>
    tpu.vector_store %arg6[%72, %c0_20, %c0_21], %75 {strides = array<i32>} : memref<8x2x32xf32, #tpu.memory_space<vmem>>, vector<1x2x32xf32>,
    %c2_i32 = arith.constant 2 : i32
    %76 = arith.index_cast %c2_i32 : i32 to index
    %c0_22 = arith.constant 0 : index
    %c0_23 = arith.constant 0 : index
    %77 = vector.load %arg2[%76, %c0_22, %c0_23] : memref<8x2x128xf32, #tpu.memory_space<vmem>>, vector<1x2x128xf32>
    %78 = vector.shape_cast %77 : vector<1x2x128xf32> to vector<2x128xf32>
    %79 = arith.truncf %71 : vector<2x32xf32> to vector<2x32xbf16>
    %cst_24 = arith.constant dense<0.000000e+00> : vector<2x128xf32>
    %80 = tpu.matmul %79, %3, %cst_24 {dimension_numbers = #tpu.dot_dimension_numbers<[1], [0], [0], [1], [0, 0, 1, 1], [], []>} : vector<2x32xbf16>, vector<32x128xbf16>, vector<2x128xf32> -> vector<2x128xf32>
    %81 = arith.addf %78, %80 : vector<2x128xf32>
    %82 = vector.extract_strided_slice %81 {offsets = [0, 0], sizes = [2, 32], strides = [1, 1]} : vector<2x128xf32> to vector<2x32xf32>
    %83 = arith.negf %82 : vector<2x32xf32>
    %84 = math.exp %83 : vector<2x32xf32>
    %cst_25 = arith.constant 1.000000e+00 : f32
    %85 = vector.broadcast %cst_25 : f32 to vector<2x32xf32>
    %86 = arith.addf %85, %84 : vector<2x32xf32>
    %87 = arith.divf %85, %86 : vector<2x32xf32>
    %88 = vector.extract_strided_slice %81 {offsets = [0, 32], sizes = [2, 32], strides = [1, 1]} : vector<2x128xf32> to vector<2x32xf32>
    %89 = arith.negf %88 : vector<2x32xf32>
    %90 = math.exp %89 : vector<2x32xf32>
    %cst_26 = arith.constant 1.000000e+00 : f32
    %91 = vector.broadcast %cst_26 : f32 to vector<2x32xf32>
    %92 = arith.addf %91, %90 : vector<2x32xf32>
    %93 = arith.divf %91, %92 : vector<2x32xf32>
    %94 = vector.extract_strided_slice %81 {offsets = [0, 64], sizes = [2, 32], strides = [1, 1]} : vector<2x128xf32> to vector<2x32xf32>
    %95 = math.tanh %94 : vector<2x32xf32>
    %96 = vector.extract_strided_slice %81 {offsets = [0, 96], sizes = [2, 32], strides = [1, 1]} : vector<2x128xf32> to vector<2x32xf32>
    %97 = arith.negf %96 : vector<2x32xf32>
    %98 = math.exp %97 : vector<2x32xf32>
    %cst_27 = arith.constant 1.000000e+00 : f32
    %99 = vector.broadcast %cst_27 : f32 to vector<2x32xf32>
    %100 = arith.addf %99, %98 : vector<2x32xf32>
    %101 = arith.divf %99, %100 : vector<2x32xf32>
    %102 = arith.mulf %93, %69 : vector<2x32xf32>
    %103 = arith.mulf %87, %95 : vector<2x32xf32>
    %104 = arith.addf %102, %103 : vector<2x32xf32>
    %105 = math.tanh %104 : vector<2x32xf32>
    %106 = arith.mulf %101, %105 : vector<2x32xf32>
    %107 = arith.index_cast %c2_i32 : i32 to index
    %c0_28 = arith.constant 0 : index
    %c0_29 = arith.constant 0 : index
    %108 = vector.load %arg6[%107, %c0_28, %c0_29] : memref<8x2x32xf32, #tpu.memory_space<vmem>>, vector<1x2x32xf32>
    %109 = vector.shape_cast %108 : vector<1x2x32xf32> to vector<2x32xf32>
    %110 = vector.shape_cast %106 : vector<2x32xf32> to vector<1x2x32xf32>
    tpu.vector_store %arg6[%107, %c0_28, %c0_29], %110 {strides = array<i32>} : memref<8x2x32xf32, #tpu.memory_space<vmem>>, vector<1x2x32xf32>,
    %c3_i32 = arith.constant 3 : i32
    %111 = arith.index_cast %c3_i32 : i32 to index
    %c0_30 = arith.constant 0 : index
    %c0_31 = arith.constant 0 : index
    %112 = vector.load %arg2[%111, %c0_30, %c0_31] : memref<8x2x128xf32, #tpu.memory_space<vmem>>, vector<1x2x128xf32>
    %113 = vector.shape_cast %112 : vector<1x2x128xf32> to vector<2x128xf32>
    %114 = arith.truncf %106 : vector<2x32xf32> to vector<2x32xbf16>
    %cst_32 = arith.constant dense<0.000000e+00> : vector<2x128xf32>
    %115 = tpu.matmul %114, %3, %cst_32 {dimension_numbers = #tpu.dot_dimension_numbers<[1], [0], [0], [1], [0, 0, 1, 1], [], []>} : vector<2x32xbf16>, vector<32x128xbf16>, vector<2x128xf32> -> vector<2x128xf32>
    %116 = arith.addf %113, %115 : vector<2x128xf32>
    %117 = vector.extract_strided_slice %116 {offsets = [0, 0], sizes = [2, 32], strides = [1, 1]} : vector<2x128xf32> to vector<2x32xf32>
    %118 = arith.negf %117 : vector<2x32xf32>
    %119 = math.exp %118 : vector<2x32xf32>
    %cst_33 = arith.constant 1.000000e+00 : f32
    %120 = vector.broadcast %cst_33 : f32 to vector<2x32xf32>
    %121 = arith.addf %120, %119 : vector<2x32xf32>
    %122 = arith.divf %120, %121 : vector<2x32xf32>
    %123 = vector.extract_strided_slice %116 {offsets = [0, 32], sizes = [2, 32], strides = [1, 1]} : vector<2x128xf32> to vector<2x32xf32>
    %124 = arith.negf %123 : vector<2x32xf32>
    %125 = math.exp %124 : vector<2x32xf32>
    %cst_34 = arith.constant 1.000000e+00 : f32
    %126 = vector.broadcast %cst_34 : f32 to vector<2x32xf32>
    %127 = arith.addf %126, %125 : vector<2x32xf32>
    %128 = arith.divf %126, %127 : vector<2x32xf32>
    %129 = vector.extract_strided_slice %116 {offsets = [0, 64], sizes = [2, 32], strides = [1, 1]} : vector<2x128xf32> to vector<2x32xf32>
    %130 = math.tanh %129 : vector<2x32xf32>
    %131 = vector.extract_strided_slice %116 {offsets = [0, 96], sizes = [2, 32], strides = [1, 1]} : vector<2x128xf32> to vector<2x32xf32>
    %132 = arith.negf %131 : vector<2x32xf32>
    %133 = math.exp %132 : vector<2x32xf32>
    %cst_35 = arith.constant 1.000000e+00 : f32
    %134 = vector.broadcast %cst_35 : f32 to vector<2x32xf32>
    %135 = arith.addf %134, %133 : vector<2x32xf32>
    %136 = arith.divf %134, %135 : vector<2x32xf32>
    %137 = arith.mulf %128, %104 : vector<2x32xf32>
    %138 = arith.mulf %122, %130 : vector<2x32xf32>
    %139 = arith.addf %137, %138 : vector<2x32xf32>
    %140 = math.tanh %139 : vector<2x32xf32>
    %141 = arith.mulf %136, %140 : vector<2x32xf32>
    %142 = arith.index_cast %c3_i32 : i32 to index
    %c0_36 = arith.constant 0 : index
    %c0_37 = arith.constant 0 : index
    %143 = vector.load %arg6[%142, %c0_36, %c0_37] : memref<8x2x32xf32, #tpu.memory_space<vmem>>, vector<1x2x32xf32>
    %144 = vector.shape_cast %143 : vector<1x2x32xf32> to vector<2x32xf32>
    %145 = vector.shape_cast %141 : vector<2x32xf32> to vector<1x2x32xf32>
    tpu.vector_store %arg6[%142, %c0_36, %c0_37], %145 {strides = array<i32>} : memref<8x2x32xf32, #tpu.memory_space<vmem>>, vector<1x2x32xf32>,
    %c4_i32 = arith.constant 4 : i32
    %146 = arith.index_cast %c4_i32 : i32 to index
    %c0_38 = arith.constant 0 : index
    %c0_39 = arith.constant 0 : index
    %147 = vector.load %arg2[%146, %c0_38, %c0_39] : memref<8x2x128xf32, #tpu.memory_space<vmem>>, vector<1x2x128xf32>
    %148 = vector.shape_cast %147 : vector<1x2x128xf32> to vector<2x128xf32>
    %149 = arith.truncf %141 : vector<2x32xf32> to vector<2x32xbf16>
    %cst_40 = arith.constant dense<0.000000e+00> : vector<2x128xf32>
    %150 = tpu.matmul %149, %3, %cst_40 {dimension_numbers = #tpu.dot_dimension_numbers<[1], [0], [0], [1], [0, 0, 1, 1], [], []>} : vector<2x32xbf16>, vector<32x128xbf16>, vector<2x128xf32> -> vector<2x128xf32>
    %151 = arith.addf %148, %150 : vector<2x128xf32>
    %152 = vector.extract_strided_slice %151 {offsets = [0, 0], sizes = [2, 32], strides = [1, 1]} : vector<2x128xf32> to vector<2x32xf32>
    %153 = arith.negf %152 : vector<2x32xf32>
    %154 = math.exp %153 : vector<2x32xf32>
    %cst_41 = arith.constant 1.000000e+00 : f32
    %155 = vector.broadcast %cst_41 : f32 to vector<2x32xf32>
    %156 = arith.addf %155, %154 : vector<2x32xf32>
    %157 = arith.divf %155, %156 : vector<2x32xf32>
    %158 = vector.extract_strided_slice %151 {offsets = [0, 32], sizes = [2, 32], strides = [1, 1]} : vector<2x128xf32> to vector<2x32xf32>
    %159 = arith.negf %158 : vector<2x32xf32>
    %160 = math.exp %159 : vector<2x32xf32>
    %cst_42 = arith.constant 1.000000e+00 : f32
    %161 = vector.broadcast %cst_42 : f32 to vector<2x32xf32>
    %162 = arith.addf %161, %160 : vector<2x32xf32>
    %163 = arith.divf %161, %162 : vector<2x32xf32>
    %164 = vector.extract_strided_slice %151 {offsets = [0, 64], sizes = [2, 32], strides = [1, 1]} : vector<2x128xf32> to vector<2x32xf32>
    %165 = math.tanh %164 : vector<2x32xf32>
    %166 = vector.extract_strided_slice %151 {offsets = [0, 96], sizes = [2, 32], strides = [1, 1]} : vector<2x128xf32> to vector<2x32xf32>
    %167 = arith.negf %166 : vector<2x32xf32>
    %168 = math.exp %167 : vector<2x32xf32>
    %cst_43 = arith.constant 1.000000e+00 : f32
    %169 = vector.broadcast %cst_43 : f32 to vector<2x32xf32>
    %170 = arith.addf %169, %168 : vector<2x32xf32>
    %171 = arith.divf %169, %170 : vector<2x32xf32>
    %172 = arith.mulf %163, %139 : vector<2x32xf32>
    %173 = arith.mulf %157, %165 : vector<2x32xf32>
    %174 = arith.addf %172, %173 : vector<2x32xf32>
    %175 = math.tanh %174 : vector<2x32xf32>
    %176 = arith.mulf %171, %175 : vector<2x32xf32>
    %177 = arith.index_cast %c4_i32 : i32 to index
    %c0_44 = arith.constant 0 : index
    %c0_45 = arith.constant 0 : index
    %178 = vector.load %arg6[%177, %c0_44, %c0_45] : memref<8x2x32xf32, #tpu.memory_space<vmem>>, vector<1x2x32xf32>
    %179 = vector.shape_cast %178 : vector<1x2x32xf32> to vector<2x32xf32>
    %180 = vector.shape_cast %176 : vector<2x32xf32> to vector<1x2x32xf32>
    tpu.vector_store %arg6[%177, %c0_44, %c0_45], %180 {strides = array<i32>} : memref<8x2x32xf32, #tpu.memory_space<vmem>>, vector<1x2x32xf32>,
    %c5_i32 = arith.constant 5 : i32
    %181 = arith.index_cast %c5_i32 : i32 to index
    %c0_46 = arith.constant 0 : index
    %c0_47 = arith.constant 0 : index
    %182 = vector.load %arg2[%181, %c0_46, %c0_47] : memref<8x2x128xf32, #tpu.memory_space<vmem>>, vector<1x2x128xf32>
    %183 = vector.shape_cast %182 : vector<1x2x128xf32> to vector<2x128xf32>
    %184 = arith.truncf %176 : vector<2x32xf32> to vector<2x32xbf16>
    %cst_48 = arith.constant dense<0.000000e+00> : vector<2x128xf32>
    %185 = tpu.matmul %184, %3, %cst_48 {dimension_numbers = #tpu.dot_dimension_numbers<[1], [0], [0], [1], [0, 0, 1, 1], [], []>} : vector<2x32xbf16>, vector<32x128xbf16>, vector<2x128xf32> -> vector<2x128xf32>
    %186 = arith.addf %183, %185 : vector<2x128xf32>
    %187 = vector.extract_strided_slice %186 {offsets = [0, 0], sizes = [2, 32], strides = [1, 1]} : vector<2x128xf32> to vector<2x32xf32>
    %188 = arith.negf %187 : vector<2x32xf32>
    %189 = math.exp %188 : vector<2x32xf32>
    %cst_49 = arith.constant 1.000000e+00 : f32
    %190 = vector.broadcast %cst_49 : f32 to vector<2x32xf32>
    %191 = arith.addf %190, %189 : vector<2x32xf32>
    %192 = arith.divf %190, %191 : vector<2x32xf32>
    %193 = vector.extract_strided_slice %186 {offsets = [0, 32], sizes = [2, 32], strides = [1, 1]} : vector<2x128xf32> to vector<2x32xf32>
    %194 = arith.negf %193 : vector<2x32xf32>
    %195 = math.exp %194 : vector<2x32xf32>
    %cst_50 = arith.constant 1.000000e+00 : f32
    %196 = vector.broadcast %cst_50 : f32 to vector<2x32xf32>
    %197 = arith.addf %196, %195 : vector<2x32xf32>
    %198 = arith.divf %196, %197 : vector<2x32xf32>
    %199 = vector.extract_strided_slice %186 {offsets = [0, 64], sizes = [2, 32], strides = [1, 1]} : vector<2x128xf32> to vector<2x32xf32>
    %200 = math.tanh %199 : vector<2x32xf32>
    %201 = vector.extract_strided_slice %186 {offsets = [0, 96], sizes = [2, 32], strides = [1, 1]} : vector<2x128xf32> to vector<2x32xf32>
    %202 = arith.negf %201 : vector<2x32xf32>
    %203 = math.exp %202 : vector<2x32xf32>
    %cst_51 = arith.constant 1.000000e+00 : f32
    %204 = vector.broadcast %cst_51 : f32 to vector<2x32xf32>
    %205 = arith.addf %204, %203 : vector<2x32xf32>
    %206 = arith.divf %204, %205 : vector<2x32xf32>
    %207 = arith.mulf %198, %174 : vector<2x32xf32>
    %208 = arith.mulf %192, %200 : vector<2x32xf32>
    %209 = arith.addf %207, %208 : vector<2x32xf32>
    %210 = math.tanh %209 : vector<2x32xf32>
    %211 = arith.mulf %206, %210 : vector<2x32xf32>
    %212 = arith.index_cast %c5_i32 : i32 to index
    %c0_52 = arith.constant 0 : index
    %c0_53 = arith.constant 0 : index
    %213 = vector.load %arg6[%212, %c0_52, %c0_53] : memref<8x2x32xf32, #tpu.memory_space<vmem>>, vector<1x2x32xf32>
    %214 = vector.shape_cast %213 : vector<1x2x32xf32> to vector<2x32xf32>
    %215 = vector.shape_cast %211 : vector<2x32xf32> to vector<1x2x32xf32>
    tpu.vector_store %arg6[%212, %c0_52, %c0_53], %215 {strides = array<i32>} : memref<8x2x32xf32, #tpu.memory_space<vmem>>, vector<1x2x32xf32>,
    %c6_i32 = arith.constant 6 : i32
    %216 = arith.index_cast %c6_i32 : i32 to index
    %c0_54 = arith.constant 0 : index
    %c0_55 = arith.constant 0 : index
    %217 = vector.load %arg2[%216, %c0_54, %c0_55] : memref<8x2x128xf32, #tpu.memory_space<vmem>>, vector<1x2x128xf32>
    %218 = vector.shape_cast %217 : vector<1x2x128xf32> to vector<2x128xf32>
    %219 = arith.truncf %211 : vector<2x32xf32> to vector<2x32xbf16>
    %cst_56 = arith.constant dense<0.000000e+00> : vector<2x128xf32>
    %220 = tpu.matmul %219, %3, %cst_56 {dimension_numbers = #tpu.dot_dimension_numbers<[1], [0], [0], [1], [0, 0, 1, 1], [], []>} : vector<2x32xbf16>, vector<32x128xbf16>, vector<2x128xf32> -> vector<2x128xf32>
    %221 = arith.addf %218, %220 : vector<2x128xf32>
    %222 = vector.extract_strided_slice %221 {offsets = [0, 0], sizes = [2, 32], strides = [1, 1]} : vector<2x128xf32> to vector<2x32xf32>
    %223 = arith.negf %222 : vector<2x32xf32>
    %224 = math.exp %223 : vector<2x32xf32>
    %cst_57 = arith.constant 1.000000e+00 : f32
    %225 = vector.broadcast %cst_57 : f32 to vector<2x32xf32>
    %226 = arith.addf %225, %224 : vector<2x32xf32>
    %227 = arith.divf %225, %226 : vector<2x32xf32>
    %228 = vector.extract_strided_slice %221 {offsets = [0, 32], sizes = [2, 32], strides = [1, 1]} : vector<2x128xf32> to vector<2x32xf32>
    %229 = arith.negf %228 : vector<2x32xf32>
    %230 = math.exp %229 : vector<2x32xf32>
    %cst_58 = arith.constant 1.000000e+00 : f32
    %231 = vector.broadcast %cst_58 : f32 to vector<2x32xf32>
    %232 = arith.addf %231, %230 : vector<2x32xf32>
    %233 = arith.divf %231, %232 : vector<2x32xf32>
    %234 = vector.extract_strided_slice %221 {offsets = [0, 64], sizes = [2, 32], strides = [1, 1]} : vector<2x128xf32> to vector<2x32xf32>
    %235 = math.tanh %234 : vector<2x32xf32>
    %236 = vector.extract_strided_slice %221 {offsets = [0, 96], sizes = [2, 32], strides = [1, 1]} : vector<2x128xf32> to vector<2x32xf32>
    %237 = arith.negf %236 : vector<2x32xf32>
    %238 = math.exp %237 : vector<2x32xf32>
    %cst_59 = arith.constant 1.000000e+00 : f32
    %239 = vector.broadcast %cst_59 : f32 to vector<2x32xf32>
    %240 = arith.addf %239, %238 : vector<2x32xf32>
    %241 = arith.divf %239, %240 : vector<2x32xf32>
    %242 = arith.mulf %233, %209 : vector<2x32xf32>
    %243 = arith.mulf %227, %235 : vector<2x32xf32>
    %244 = arith.addf %242, %243 : vector<2x32xf32>
    %245 = math.tanh %244 : vector<2x32xf32>
    %246 = arith.mulf %241, %245 : vector<2x32xf32>
    %247 = arith.index_cast %c6_i32 : i32 to index
    %c0_60 = arith.constant 0 : index
    %c0_61 = arith.constant 0 : index
    %248 = vector.load %arg6[%247, %c0_60, %c0_61] : memref<8x2x32xf32, #tpu.memory_space<vmem>>, vector<1x2x32xf32>
    %249 = vector.shape_cast %248 : vector<1x2x32xf32> to vector<2x32xf32>
    %250 = vector.shape_cast %246 : vector<2x32xf32> to vector<1x2x32xf32>
    tpu.vector_store %arg6[%247, %c0_60, %c0_61], %250 {strides = array<i32>} : memref<8x2x32xf32, #tpu.memory_space<vmem>>, vector<1x2x32xf32>,
    %c7_i32 = arith.constant 7 : i32
    %251 = arith.index_cast %c7_i32 : i32 to index
    %c0_62 = arith.constant 0 : index
    %c0_63 = arith.constant 0 : index
    %252 = vector.load %arg2[%251, %c0_62, %c0_63] : memref<8x2x128xf32, #tpu.memory_space<vmem>>, vector<1x2x128xf32>
    %253 = vector.shape_cast %252 : vector<1x2x128xf32> to vector<2x128xf32>
    %254 = arith.truncf %246 : vector<2x32xf32> to vector<2x32xbf16>
    %cst_64 = arith.constant dense<0.000000e+00> : vector<2x128xf32>
    %255 = tpu.matmul %254, %3, %cst_64 {dimension_numbers = #tpu.dot_dimension_numbers<[1], [0], [0], [1], [0, 0, 1, 1], [], []>} : vector<2x32xbf16>, vector<32x128xbf16>, vector<2x128xf32> -> vector<2x128xf32>
    %256 = arith.addf %253, %255 : vector<2x128xf32>
    %257 = vector.extract_strided_slice %256 {offsets = [0, 0], sizes = [2, 32], strides = [1, 1]} : vector<2x128xf32> to vector<2x32xf32>
    %258 = arith.negf %257 : vector<2x32xf32>
    %259 = math.exp %258 : vector<2x32xf32>
    %cst_65 = arith.constant 1.000000e+00 : f32
    %260 = vector.broadcast %cst_65 : f32 to vector<2x32xf32>
    %261 = arith.addf %260, %259 : vector<2x32xf32>
    %262 = arith.divf %260, %261 : vector<2x32xf32>
    %263 = vector.extract_strided_slice %256 {offsets = [0, 32], sizes = [2, 32], strides = [1, 1]} : vector<2x128xf32> to vector<2x32xf32>
    %264 = arith.negf %263 : vector<2x32xf32>
    %265 = math.exp %264 : vector<2x32xf32>
    %cst_66 = arith.constant 1.000000e+00 : f32
    %266 = vector.broadcast %cst_66 : f32 to vector<2x32xf32>
    %267 = arith.addf %266, %265 : vector<2x32xf32>
    %268 = arith.divf %266, %267 : vector<2x32xf32>
    %269 = vector.extract_strided_slice %256 {offsets = [0, 64], sizes = [2, 32], strides = [1, 1]} : vector<2x128xf32> to vector<2x32xf32>
    %270 = math.tanh %269 : vector<2x32xf32>
    %271 = vector.extract_strided_slice %256 {offsets = [0, 96], sizes = [2, 32], strides = [1, 1]} : vector<2x128xf32> to vector<2x32xf32>
    %272 = arith.negf %271 : vector<2x32xf32>
    %273 = math.exp %272 : vector<2x32xf32>
    %cst_67 = arith.constant 1.000000e+00 : f32
    %274 = vector.broadcast %cst_67 : f32 to vector<2x32xf32>
    %275 = arith.addf %274, %273 : vector<2x32xf32>
    %276 = arith.divf %274, %275 : vector<2x32xf32>
    %277 = arith.mulf %268, %244 : vector<2x32xf32>
    %278 = arith.mulf %262, %270 : vector<2x32xf32>
    %279 = arith.addf %277, %278 : vector<2x32xf32>
    %280 = math.tanh %279 : vector<2x32xf32>
    %281 = arith.mulf %276, %280 : vector<2x32xf32>
    %282 = arith.index_cast %c7_i32 : i32 to index
    %c0_68 = arith.constant 0 : index
    %c0_69 = arith.constant 0 : index
    %283 = vector.load %arg6[%282, %c0_68, %c0_69] : memref<8x2x32xf32, #tpu.memory_space<vmem>>, vector<1x2x32xf32>
    %284 = vector.shape_cast %283 : vector<1x2x32xf32> to vector<2x32xf32>
    %285 = vector.shape_cast %281 : vector<2x32xf32> to vector<1x2x32xf32>
    tpu.vector_store %arg6[%282, %c0_68, %c0_69], %285 {strides = array<i32>} : memref<8x2x32xf32, #tpu.memory_space<vmem>>, vector<1x2x32xf32>,
    %c8_i32 = arith.constant 8 : i32
    %c0_70 = arith.constant 0 : index
    %c0_71 = arith.constant 0 : index
    %286 = vector.load %arg9[%c0_70, %c0_71] : memref<2x32xf32, #tpu.memory_space<vmem>>, vector<2x32xf32>
    tpu.vector_store %arg9[%c0_70, %c0_71], %281 {strides = array<i32>} : memref<2x32xf32, #tpu.memory_space<vmem>>, vector<2x32xf32>,
    %c0_72 = arith.constant 0 : index
    %c0_73 = arith.constant 0 : index
    %287 = vector.load %arg10[%c0_72, %c0_73] : memref<2x32xf32, #tpu.memory_space<vmem>>, vector<2x32xf32>
    tpu.vector_store %arg10[%c0_72, %c0_73], %279 {strides = array<i32>} : memref<2x32xf32, #tpu.memory_space<vmem>>, vector<2x32xf32>,
    %c0_i32_74 = arith.constant 0 : i32
    %288 = arith.cmpi eq, %arg1, %c0_i32_74 : i32
    %289 = arith.extui %288 : i1 to i32
    %c0_i32_75 = arith.constant 0 : i32
    %290 = arith.cmpi ne, %289, %c0_i32_75 : i32
    scf.if %290 {
      %c0_76 = arith.constant 0 : index
      %c0_77 = arith.constant 0 : index
      %291 = vector.load %arg7[%c0_76, %c0_77] : memref<2x32xf32, #tpu.memory_space<vmem>>, vector<2x32xf32>
      tpu.vector_store %arg7[%c0_76, %c0_77], %281 {strides = array<i32>} : memref<2x32xf32, #tpu.memory_space<vmem>>, vector<2x32xf32>,
      %c0_78 = arith.constant 0 : index
      %c0_79 = arith.constant 0 : index
      %292 = vector.load %arg8[%c0_78, %c0_79] : memref<2x32xf32, #tpu.memory_space<vmem>>, vector<2x32xf32>
      tpu.vector_store %arg8[%c0_78, %c0_79], %279 {strides = array<i32>} : memref<2x32xf32, #tpu.memory_space<vmem>>, vector<2x32xf32>,
    } else {
    }
    return
  }
  func.func @transform_0(%arg0: i32, %arg1: i32) -> (i32, i32, i32) {
    %c0_i32 = arith.constant 0 : i32
    %c0_i32_0 = arith.constant 0 : i32
    return %arg1, %arg0, %c0_i32 : i32, i32, i32
  }
  func.func @transform_1(%arg0: i32, %arg1: i32) -> (i32, i32) {
    %c0_i32 = arith.constant 0 : i32
    %c0_i32_0 = arith.constant 0 : i32
    %c0_i32_1 = arith.constant 0 : i32
    return %c0_i32, %c0_i32_0 : i32, i32
  }
  func.func @transform_2(%arg0: i32, %arg1: i32) -> (i32, i32) {
    %c0_i32 = arith.constant 0 : i32
    %c0_i32_0 = arith.constant 0 : i32
    return %arg0, %c0_i32 : i32, i32
  }
  func.func @transform_3(%arg0: i32, %arg1: i32) -> (i32, i32) {
    %c0_i32 = arith.constant 0 : i32
    %c0_i32_0 = arith.constant 0 : i32
    return %arg0, %c0_i32 : i32, i32
  }
  func.func @transform_4(%arg0: i32, %arg1: i32) -> (i32, i32, i32) {
    %c0_i32 = arith.constant 0 : i32
    %c0_i32_0 = arith.constant 0 : i32
    return %arg1, %arg0, %c0_i32 : i32, i32, i32
  }
  func.func @transform_5(%arg0: i32, %arg1: i32) -> (i32, i32) {
    %c0_i32 = arith.constant 0 : i32
    %c0_i32_0 = arith.constant 0 : i32
    return %arg0, %c0_i32 : i32, i32
  }
  func.func @transform_6(%arg0: i32, %arg1: i32) -> (i32, i32) {
    %c0_i32 = arith.constant 0 : i32
    %c0_i32_0 = arith.constant 0 : i32
    return %arg0, %c0_i32 : i32, i32
  }
}

</mosaic_0001>

<llo_original>
// kernel: tpu_custom_call.1
$region0: #{tpu_custom_call.1}
  #allocation0 [shape = 'u32[]', space=smem, size = 0x4, offset = 0x4, fixed_abs, tag = 'smem constant byte address 0x4 - core index']
  #allocation1 [shape = 'u32[144,128]{1,0:T(1,128)}', space=vmem, size = 0x12000, scoped, tag = 'internal scratch']
  #allocation2 [shape = 'f32[2,32]{1,0:T(2,128)}', space=vmem, size = 0x400, scoped, tag = 'scratch operand']
  #allocation3 [shape = 'f32[2,32]{1,0:T(2,128)}', space=vmem, size = 0x400, scoped, tag = 'scratch operand']
  %s0 = inlined_call_operand.hbm [shape: f32[8,2,128], index: 0, kind: input, shape index: {}]
  %s1 = inlined_call_operand.hbm [shape: bf16[32,128], index: 1, kind: input, shape index: {}]
  %s2 = inlined_call_operand.vmem [shape: f32[2,32], index: 2, kind: input, shape index: {}]
  %s3 = inlined_call_operand.vmem [shape: f32[2,32], index: 3, kind: input, shape index: {}]
  %s4 = inlined_call_operand.hbm [shape: f32[8,2,32], index: 4, kind: output, shape index: {0}]
  %s5 = inlined_call_operand.hbm [shape: f32[2,32], index: 5, kind: output, shape index: {1}]
  %s6 = inlined_call_operand.hbm [shape: f32[2,32], index: 6, kind: output, shape index: {2}]
  %7 = xla_tuple %s4, %s5, %s6
  %s8 = sld [smem:[#allocation0]]
  $region58: #{tpu_custom_call.1} parent=0
    _
  %s10 = ssub.s32 1, %s8
  %s11 = scalar_select 0, %s10, %s8
  $region1: #{tpu_custom_call.1} parent=0
    #allocation4 [shape = 'u8[8192]{0}', space=vmem, size = 0x2000, scoped, tag = 'input window, operand 0, single buffered']
    #allocation5 [shape = 's32[1]{0}', space=sflag, size = 0x4, scoped, tag = 'scoped memory for tpu_custom_call.1']
    #allocation6 [shape = 's32[1]{0}', space=sflag, size = 0x4, scoped, tag = 'scoped memory for tpu_custom_call.1']
    #allocation7 [shape = 'u8[8192]{0}', space=vmem, size = 0x2000, scoped, tag = 'input window, operand 1, single buffered']
    #allocation8 [shape = 's32[1]{0}', space=sflag, size = 0x4, scoped, tag = 'scoped memory for tpu_custom_call.1']
    #allocation9 [shape = 'u8[8192]{0}', space=vmem, size = 0x2000, scoped, tag = 'output window, operand 0, single buffered']
    #allocation10 [shape = 'u8[1024]{0}', space=vmem, size = 0x400, scoped, tag = 'output window, operand 1, single buffered']
    #allocation11 [shape = 's32[1]{0}', space=sflag, size = 0x4, scoped, tag = 'scoped memory for tpu_custom_call.1']
    #allocation12 [shape = 'u8[1024]{0}', space=vmem, size = 0x400, scoped, tag = 'output window, operand 2, single buffered']
    %12 = vsyncpa [#allocation5], 0
    %13 = vsyncpa [#allocation8], 0
    %14 = vsyncpa [#allocation6], 0
    %15 = vsyncpa [#allocation11], 0
    // Predicated region
    $region2: #{tpu_custom_call.1} parent=1 // pred_check
      _
    $region3: #{tpu_custom_call.1} parent=1 // pred_check_branch
      %17 = sbr.rel (0) target = $region5
    $region4: #{tpu_custom_call.1} parent=1 // pred_region
      %s19 = ssub.s32 256, 256
      %20 = vsyncadd [#allocation5], %s19
      %s21 = sshll.u32 [#allocation4], 4
      %s22 = int_to_ptr.vmem [resolvable:$true] %s21
      %27 = dma.hbm_to_vmem [thread:$0]  %s0, 256, %s22, [#allocation5], 32, 32, 2
    $region5: #{tpu_custom_call.1} parent=1 // pred_fallthru
      _
    // Predicated region
    $region6: #{tpu_custom_call.1} parent=1 // pred_check
      _
    $region7: #{tpu_custom_call.1} parent=1 // pred_check_branch
      %29 = sbr.rel (0) target = $region9
    $region8: #{tpu_custom_call.1} parent=1 // pred_region
      %s31 = ssub.s32 256, 256
      %32 = vsyncadd [#allocation8], %s31
      %s33 = sshll.u32 [#allocation7], 4
      %s34 = int_to_ptr.vmem [resolvable:$true] %s33
      %39 = dma.hbm_to_vmem [thread:$0]  %s1, 256, %s34, [#allocation8], 64, 64, 4
    $region9: #{tpu_custom_call.1} parent=1 // pred_fallthru
      _
    // Predicated region
    $region10: #{tpu_custom_call.1} parent=1 // pred_check
      _
    $region11: #{tpu_custom_call.1} parent=1 // pred_check_branch
      %41 = sbr.rel (0) target = $region13
    $region12: #{tpu_custom_call.1} parent=1 // pred_region
      _
    $region13: #{tpu_custom_call.1} parent=1 // pred_fallthru
      _
    // Predicated region
    $region14: #{tpu_custom_call.1} parent=1 // pred_check
      _
    $region15: #{tpu_custom_call.1} parent=1 // pred_check_branch
      %43 = sbr.rel (0) target = $region17
    $region16: #{tpu_custom_call.1} parent=1 // pred_region
      _
    $region17: #{tpu_custom_call.1} parent=1 // pred_fallthru
      _
    // Predicated region
    $region18: #{tpu_custom_call.1} parent=1 // pred_check
      _
    $region19: #{tpu_custom_call.1} parent=1 // pred_check_branch
      %45 = sbr.rel (0) target = $region21
    $region20: #{tpu_custom_call.1} parent=1 // pred_region
      %46 = dma.done [#allocation5], 256
    $region21: #{tpu_custom_call.1} parent=1 // pred_fallthru
      _
    // Predicated region
    $region22: #{tpu_custom_call.1} parent=1 // pred_check
      _
    $region23: #{tpu_custom_call.1} parent=1 // pred_check_branch
      %48 = sbr.rel (0) target = $region25
    $region24: #{tpu_custom_call.1} parent=1 // pred_region
      %49 = dma.done [#allocation8], 256
    $region25: #{tpu_custom_call.1} parent=1 // pred_fallthru
      _
    %p51 = scmp.eq.s32.totalorder 0, 0
    // Predicated region
    $region26: #{tpu_custom_call.1} parent=1 // pred_check
      %p52 = pneg %p51
    $region27: #{tpu_custom_call.1} parent=1 // pred_check_branch
      %54 = sbr.rel (%p52) target = $region29
    $region28: #{tpu_custom_call.1} parent=1 // pred_region
      %v55 = vld [vmem:[%s2] sm:$0x3]
      %vm56 = vcmask 254976
      %57 = vst.msk [vmem:[#allocation2] sm:$0x3] %vm56, %v55
      %v58 = vld [vmem:[%s3] sm:$0x3]
      %59 = vst.msk [vmem:[#allocation3] sm:$0x3] %vm56, %v58
    $region29: #{tpu_custom_call.1} parent=1 // pred_fallthru
      _
    %v60 = vld [vmem:[#allocation7] sm:$0xf]
    %v61 = vld [vmem:[#allocation7 + $0x4] sm:$0xf]
    %v62 = vld [vmem:[#allocation7 + $0x8] sm:$0xf]
    %v63 = vld [vmem:[#allocation7 + $0xc] sm:$0xf]
    %v64 = vld [vmem:[#allocation2] sm:$0x3]
    %v65 = vld [vmem:[#allocation3] sm:$0x3]
    %v66 = vld [vmem:[#allocation4] sm:$0x3]
    %v67 = vpack.c.bf16 %v64, %v64
    %v72 = vunpack.c.l.b16 %v60
    %v73 = vunpack.c.l.b16 %v61
    %v74 = vunpack.c.l.b16 %v62
    %v75 = vunpack.c.l.b16 %v63
    %v76 = vpack.c.b16 %v73, %v72
    %v77 = vpack.c.b16 %v75, %v74
    %vm80 = vcmask 261120
    %v82 = vsel %vm80, %v67, 0
    %84 = vmatprep.subr.bf16.mxu0 0
    %85 = vmatpush1.bf16.msra.mxu0 0
    %86 = vmatprep.subr.bf16.mxu0 0
    %87 = vmatpush1.bf16.msra.mxu0 0
    %88 = vmatprep.subr.bf16.mxu0 0
    %89 = vmatpush1.bf16.msra.mxu0 0
    %90 = vmatprep.subr.bf16.mxu0 0
    %91 = vmatpush1.bf16.msra.mxu0 0
    %92 = vmatprep.subr.bf16.mxu0 0
    %93 = vmatpush1.bf16.msra.mxu0 0
    %94 = vmatprep.subr.bf16.mxu0 0
    %95 = vmatpush1.bf16.msra.mxu0 0
    %96 = vmatprep.subr.bf16.mxu0 0
    %97 = vmatpush1.bf16.msra.mxu0 %v77
    %98 = vmatprep.subr.bf16.mxu0 0
    %99 = vmatpush1.bf16.msra.mxu0 %v76
    %100 = vmatprep.subr.bf16.mxu0 0
    %101 = vmatpush2.bf16.msra.mxu0 0
    %102 = vmatprep.subr.bf16.mxu0 0
    %103 = vmatpush2.bf16.msra.mxu0 0
    %104 = vmatprep.subr.bf16.mxu0 0
    %105 = vmatpush2.bf16.msra.mxu0 0
    %106 = vmatprep.subr.bf16.mxu0 0
    %107 = vmatpush2.bf16.msra.mxu0 0
    %108 = vmatprep.subr.bf16.mxu0 0
    %109 = vmatpush2.bf16.msra.mxu0 0
    %110 = vmatprep.subr.bf16.mxu0 0
    %111 = vmatpush2.bf16.msra.mxu0 0
    %112 = vmatprep.subr.bf16.mxu0 0
    %113 = vmatpush2.bf16.msra.mxu0 0
    %114 = vmatprep.subr.bf16.mxu0 0
    %115 = vmatpush2.bf16.msra.mxu0 0
    %116 = vmatprep.mubr.bf16.mxu0 0
    %117 = vmatmul.mubr.bf16.gmra.mxu0 %v82
    %v118 = vpop.f32.mrf.mxu0
    %v119 = vadd.f32 0.0, %v118
    %v120 = vpop.f32.mrf.mxu0
    %v121 = vpop.f32.mrf.mxu0
    %v122 = vpop.f32.mrf.mxu0
    %123 = vdwg.mxu0
    %v124 = vadd.f32 %v66, %v119
    %v125 = vxor.u32 %v124, 2147483648
    %v126 = vmul.f32 %v125, 1.442695
    %v127 = vpow.pop %v126
    %v128 = vadd.f32 %v127, 1.0
    %v129 = vrcp.pop %v128
    %v130 = vmul.f32 1.0, %v129
    %v131 = vtanh.pop %v124
    %133 = vrot.lane.b32.xlu0 %v65, 32
    %v134 = vpop.permute.xlu0 %133
    %v136 = vmul.f32 %v130, %v134
    %138 = vrot.lane.b32.xlu0 %v131, 64
    %v139 = vpop.permute.xlu0 %138
    %v141 = vmul.f32 %v130, %v139
    %143 = vrot.lane.b32.xlu0 %v141, 32
    %v144 = vpop.permute.xlu0 %143
    %v146 = vadd.f32 %v136, %v144
    %v147 = vtanh.pop %v146
    %149 = vrot.lane.b32.xlu0 %v147, 64
    %v150 = vpop.permute.xlu0 %149
    %v152 = vmul.f32 %v130, %v150
    %154 = vrot.lane.b32.xlu0 %v152, 32
    %v155 = vpop.permute.xlu0 %154
    %vm157 = vcmask 254976
    %158 = vst.msk [vmem:[#allocation9] sm:$0x3] %vm157, %v155
    %s159 = scalar_lea.vmem [#allocation4], 2
    %v160 = vld [vmem:[%s159] sm:$0x3]
    %v161 = vpack.c.bf16 %v152, %v152
    %163 = vrot.lane.b32.xlu0 %v161, 32
    %v164 = vpop.permute.xlu0 %163
    %v166 = vsel %vm80, %v164, 0
    %168 = vmatprep.subr.bf16.mxu0 0
    %169 = vmatpush1.bf16.msra.mxu0 0
    %170 = vmatprep.subr.bf16.mxu0 0
    %171 = vmatpush1.bf16.msra.mxu0 0
    %172 = vmatprep.subr.bf16.mxu0 0
    %173 = vmatpush1.bf16.msra.mxu0 0
    %174 = vmatprep.subr.bf16.mxu0 0
    %175 = vmatpush1.bf16.msra.mxu0 0
    %176 = vmatprep.subr.bf16.mxu0 0
    %177 = vmatpush1.bf16.msra.mxu0 0
    %178 = vmatprep.subr.bf16.mxu0 0
    %179 = vmatpush1.bf16.msra.mxu0 0
    %180 = vmatprep.subr.bf16.mxu0 0
    %181 = vmatpush1.bf16.msra.mxu0 %v77
    %182 = vmatprep.subr.bf16.mxu0 0
    %183 = vmatpush1.bf16.msra.mxu0 %v76
    %184 = vmatprep.subr.bf16.mxu0 0
    %185 = vmatpush2.bf16.msra.mxu0 0
    %186 = vmatprep.subr.bf16.mxu0 0
    %187 = vmatpush2.bf16.msra.mxu0 0
    %188 = vmatprep.subr.bf16.mxu0 0
    %189 = vmatpush2.bf16.msra.mxu0 0
    %190 = vmatprep.subr.bf16.mxu0 0
    %191 = vmatpush2.bf16.msra.mxu0 0
    %192 = vmatprep.subr.bf16.mxu0 0
    %193 = vmatpush2.bf16.msra.mxu0 0
    %194 = vmatprep.subr.bf16.mxu0 0
    %195 = vmatpush2.bf16.msra.mxu0 0
    %196 = vmatprep.subr.bf16.mxu0 0
    %197 = vmatpush2.bf16.msra.mxu0 0
    %198 = vmatprep.subr.bf16.mxu0 0
    %199 = vmatpush2.bf16.msra.mxu0 0
    %200 = vmatprep.mubr.bf16.mxu0 0
    %201 = vmatmul.mubr.bf16.gmra.mxu0 %v166
    %v202 = vpop.f32.mrf.mxu0
    %v203 = vadd.f32 0.0, %v202
    %v204 = vpop.f32.mrf.mxu0
    %v205 = vpop.f32.mrf.mxu0
    %v206 = vpop.f32.mrf.mxu0
    %207 = vdwg.mxu0
    %v208 = vadd.f32 %v160, %v203
    %v209 = vxor.u32 %v208, 2147483648
    %v210 = vmul.f32 %v209, 1.442695
    %v211 = vpow.pop %v210
    %v212 = vadd.f32 %v211, 1.0
    %v213 = vrcp.pop %v212
    %v214 = vmul.f32 1.0, %v213
    %v215 = vtanh.pop %v208
    %v216 = vmul.f32 %v214, %v146
    %218 = vrot.lane.b32.xlu0 %v215, 64
    %v219 = vpop.permute.xlu0 %218
    %v221 = vmul.f32 %v214, %v219
    %223 = vrot.lane.b32.xlu0 %v221, 32
    %v224 = vpop.permute.xlu0 %223
    %v226 = vadd.f32 %v216, %v224
    %v227 = vtanh.pop %v226
    %229 = vrot.lane.b32.xlu0 %v227, 64
    %v230 = vpop.permute.xlu0 %229
    %v232 = vmul.f32 %v214, %v230
    %234 = vrot.lane.b32.xlu0 %v232, 32
    %v235 = vpop.permute.xlu0 %234
    %s237 = scalar_lea.vmem [#allocation9], 2
    %238 = vst.msk [vmem:[%s237] sm:$0x3] %vm157, %v235
    %s239 = scalar_lea.vmem [#allocation4], 4
    %v240 = vld [vmem:[%s239] sm:$0x3]
    %v241 = vpack.c.bf16 %v232, %v232
    %243 = vrot.lane.b32.xlu0 %v241, 32
    %v244 = vpop.permute.xlu0 %243
    %v246 = vsel %vm80, %v244, 0
    %248 = vmatprep.subr.bf16.mxu0 0
    %249 = vmatpush1.bf16.msra.mxu0 0
    %250 = vmatprep.subr.bf16.mxu0 0
    %251 = vmatpush1.bf16.msra.mxu0 0
    %252 = vmatprep.subr.bf16.mxu0 0
    %253 = vmatpush1.bf16.msra.mxu0 0
    %254 = vmatprep.subr.bf16.mxu0 0
    %255 = vmatpush1.bf16.msra.mxu0 0
    %256 = vmatprep.subr.bf16.mxu0 0
    %257 = vmatpush1.bf16.msra.mxu0 0
    %258 = vmatprep.subr.bf16.mxu0 0
    %259 = vmatpush1.bf16.msra.mxu0 0
    %260 = vmatprep.subr.bf16.mxu0 0
    %261 = vmatpush1.bf16.msra.mxu0 %v77
    %262 = vmatprep.subr.bf16.mxu0 0
    %263 = vmatpush1.bf16.msra.mxu0 %v76
    %264 = vmatprep.subr.bf16.mxu0 0
    %265 = vmatpush2.bf16.msra.mxu0 0
    %266 = vmatprep.subr.bf16.mxu0 0
    %267 = vmatpush2.bf16.msra.mxu0 0
    %268 = vmatprep.subr.bf16.mxu0 0
    %269 = vmatpush2.bf16.msra.mxu0 0
    %270 = vmatprep.subr.bf16.mxu0 0
    %271 = vmatpush2.bf16.msra.mxu0 0
    %272 = vmatprep.subr.bf16.mxu0 0
    %273 = vmatpush2.bf16.msra.mxu0 0
    %274 = vmatprep.subr.bf16.mxu0 0
    %275 = vmatpush2.bf16.msra.mxu0 0
    %276 = vmatprep.subr.bf16.mxu0 0
    %277 = vmatpush2.bf16.msra.mxu0 0
    %278 = vmatprep.subr.bf16.mxu0 0
    %279 = vmatpush2.bf16.msra.mxu0 0
    %280 = vmatprep.mubr.bf16.mxu0 0
    %281 = vmatmul.mubr.bf16.gmra.mxu0 %v246
    %v282 = vpop.f32.mrf.mxu0
    %v283 = vadd.f32 0.0, %v282
    %v284 = vpop.f32.mrf.mxu0
    %v285 = vpop.f32.mrf.mxu0
    %v286 = vpop.f32.mrf.mxu0
    %287 = vdwg.mxu0
    %v288 = vadd.f32 %v240, %v283
    %v289 = vxor.u32 %v288, 2147483648
    %v290 = vmul.f32 %v289, 1.442695
    %v291 = vpow.pop %v290
    %v292 = vadd.f32 %v291, 1.0
    %v293 = vrcp.pop %v292
    %v294 = vmul.f32 1.0, %v293
    %v295 = vtanh.pop %v288
    %v296 = vmul.f32 %v294, %v226
    %298 = vrot.lane.b32.xlu0 %v295, 64
    %v299 = vpop.permute.xlu0 %298
    %v301 = vmul.f32 %v294, %v299
    %303 = vrot.lane.b32.xlu0 %v301, 32
    %v304 = vpop.permute.xlu0 %303
    %v306 = vadd.f32 %v296, %v304
    %v307 = vtanh.pop %v306
    %309 = vrot.lane.b32.xlu0 %v307, 64
    %v310 = vpop.permute.xlu0 %309
    %v312 = vmul.f32 %v294, %v310
    %314 = vrot.lane.b32.xlu0 %v312, 32
    %v315 = vpop.permute.xlu0 %314
    %s317 = scalar_lea.vmem [#allocation9], 4
    %318 = vst.msk [vmem:[%s317] sm:$0x3] %vm157, %v315
    %s319 = scalar_lea.vmem [#allocation4], 6
    %v320 = vld [vmem:[%s319] sm:$0x3]
    %v321 = vpack.c.bf16 %v312, %v312
    %323 = vrot.lane.b32.xlu0 %v321, 32
    %v324 = vpop.permute.xlu0 %323
    %v326 = vsel %vm80, %v324, 0
    %328 = vmatprep.subr.bf16.mxu0 0
    %329 = vmatpush1.bf16.msra.mxu0 0
    %330 = vmatprep.subr.bf16.mxu0 0
    %331 = vmatpush1.bf16.msra.mxu0 0
    %332 = vmatprep.subr.bf16.mxu0 0
    %333 = vmatpush1.bf16.msra.mxu0 0
    %334 = vmatprep.subr.bf16.mxu0 0
    %335 = vmatpush1.bf16.msra.mxu0 0
    %336 = vmatprep.subr.bf16.mxu0 0
    %337 = vmatpush1.bf16.msra.mxu0 0
    %338 = vmatprep.subr.bf16.mxu0 0
    %339 = vmatpush1.bf16.msra.mxu0 0
    %340 = vmatprep.subr.bf16.mxu0 0
    %341 = vmatpush1.bf16.msra.mxu0 %v77
    %342 = vmatprep.subr.bf16.mxu0 0
    %343 = vmatpush1.bf16.msra.mxu0 %v76
    %344 = vmatprep.subr.bf16.mxu0 0
    %345 = vmatpush2.bf16.msra.mxu0 0
    %346 = vmatprep.subr.bf16.mxu0 0
    %347 = vmatpush2.bf16.msra.mxu0 0
    %348 = vmatprep.subr.bf16.mxu0 0
    %349 = vmatpush2.bf16.msra.mxu0 0
    %350 = vmatprep.subr.bf16.mxu0 0
    %351 = vmatpush2.bf16.msra.mxu0 0
    %352 = vmatprep.subr.bf16.mxu0 0
    %353 = vmatpush2.bf16.msra.mxu0 0
    %354 = vmatprep.subr.bf16.mxu0 0
    %355 = vmatpush2.bf16.msra.mxu0 0
    %356 = vmatprep.subr.bf16.mxu0 0
    %357 = vmatpush2.bf16.msra.mxu0 0
    %358 = vmatprep.subr.bf16.mxu0 0
    %359 = vmatpush2.bf16.msra.mxu0 0
    %360 = vmatprep.mubr.bf16.mxu0 0
    %361 = vmatmul.mubr.bf16.gmra.mxu0 %v326
    %v362 = vpop.f32.mrf.mxu0
    %v363 = vadd.f32 0.0, %v362
    %v364 = vpop.f32.mrf.mxu0
    %v365 = vpop.f32.mrf.mxu0
    %v366 = vpop.f32.mrf.mxu0
    %367 = vdwg.mxu0
    %v368 = vadd.f32 %v320, %v363
    %v369 = vxor.u32 %v368, 2147483648
    %v370 = vmul.f32 %v369, 1.442695
    %v371 = vpow.pop %v370
    %v372 = vadd.f32 %v371, 1.0
    %v373 = vrcp.pop %v372
    %v374 = vmul.f32 1.0, %v373
    %v375 = vtanh.pop %v368
    %v376 = vmul.f32 %v374, %v306
    %378 = vrot.lane.b32.xlu0 %v375, 64
    %v379 = vpop.permute.xlu0 %378
    %v381 = vmul.f32 %v374, %v379
    %383 = vrot.lane.b32.xlu0 %v381, 32
    %v384 = vpop.permute.xlu0 %383
    %v386 = vadd.f32 %v376, %v384
    %v387 = vtanh.pop %v386
    %389 = vrot.lane.b32.xlu0 %v387, 64
    %v390 = vpop.permute.xlu0 %389
    %v392 = vmul.f32 %v374, %v390
    %394 = vrot.lane.b32.xlu0 %v392, 32
    %v395 = vpop.permute.xlu0 %394
    %s397 = scalar_lea.vmem [#allocation9], 6
    %398 = vst.msk [vmem:[%s397] sm:$0x3] %vm157, %v395
    %s399 = scalar_lea.vmem [#allocation4], 8
    %v400 = vld [vmem:[%s399] sm:$0x3]
    %v401 = vpack.c.bf16 %v392, %v392
    %403 = vrot.lane.b32.xlu0 %v401, 32
    %v404 = vpop.permute.xlu0 %403
    %v406 = vsel %vm80, %v404, 0
    %408 = vmatprep.subr.bf16.mxu0 0
    %409 = vmatpush1.bf16.msra.mxu0 0
    %410 = vmatprep.subr.bf16.mxu0 0
    %411 = vmatpush1.bf16.msra.mxu0 0
    %412 = vmatprep.subr.bf16.mxu0 0
    %413 = vmatpush1.bf16.msra.mxu0 0
    %414 = vmatprep.subr.bf16.mxu0 0
    %415 = vmatpush1.bf16.msra.mxu0 0
    %416 = vmatprep.subr.bf16.mxu0 0
    %417 = vmatpush1.bf16.msra.mxu0 0
    %418 = vmatprep.subr.bf16.mxu0 0
    %419 = vmatpush1.bf16.msra.mxu0 0
    %420 = vmatprep.subr.bf16.mxu0 0
    %421 = vmatpush1.bf16.msra.mxu0 %v77
    %422 = vmatprep.subr.bf16.mxu0 0
    %423 = vmatpush1.bf16.msra.mxu0 %v76
    %424 = vmatprep.subr.bf16.mxu0 0
    %425 = vmatpush2.bf16.msra.mxu0 0
    %426 = vmatprep.subr.bf16.mxu0 0
    %427 = vmatpush2.bf16.msra.mxu0 0
    %428 = vmatprep.subr.bf16.mxu0 0
    %429 = vmatpush2.bf16.msra.mxu0 0
    %430 = vmatprep.subr.bf16.mxu0 0
    %431 = vmatpush2.bf16.msra.mxu0 0
    %432 = vmatprep.subr.bf16.mxu0 0
    %433 = vmatpush2.bf16.msra.mxu0 0
    %434 = vmatprep.subr.bf16.mxu0 0
    %435 = vmatpush2.bf16.msra.mxu0 0
    %436 = vmatprep.subr.bf16.mxu0 0
    %437 = vmatpush2.bf16.msra.mxu0 0
    %438 = vmatprep.subr.bf16.mxu0 0
    %439 = vmatpush2.bf16.msra.mxu0 0
    %440 = vmatprep.mubr.bf16.mxu0 0
    %441 = vmatmul.mubr.bf16.gmra.mxu0 %v406
    %v442 = vpop.f32.mrf.mxu0
    %v443 = vadd.f32 0.0, %v442
    %v444 = vpop.f32.mrf.mxu0
    %v445 = vpop.f32.mrf.mxu0
    %v446 = vpop.f32.mrf.mxu0
    %447 = vdwg.mxu0
    %v448 = vadd.f32 %v400, %v443
    %v449 = vxor.u32 %v448, 2147483648
    %v450 = vmul.f32 %v449, 1.442695
    %v451 = vpow.pop %v450
    %v452 = vadd.f32 %v451, 1.0
    %v453 = vrcp.pop %v452
    %v454 = vmul.f32 1.0, %v453
    %v455 = vtanh.pop %v448
    %v456 = vmul.f32 %v454, %v386
    %458 = vrot.lane.b32.xlu0 %v455, 64
    %v459 = vpop.permute.xlu0 %458
    %v461 = vmul.f32 %v454, %v459
    %463 = vrot.lane.b32.xlu0 %v461, 32
    %v464 = vpop.permute.xlu0 %463
    %v466 = vadd.f32 %v456, %v464
    %v467 = vtanh.pop %v466
    %469 = vrot.lane.b32.xlu0 %v467, 64
    %v470 = vpop.permute.xlu0 %469
    %v472 = vmul.f32 %v454, %v470
    %474 = vrot.lane.b32.xlu0 %v472, 32
    %v475 = vpop.permute.xlu0 %474
    %s477 = scalar_lea.vmem [#allocation9], 8
    %478 = vst.msk [vmem:[%s477] sm:$0x3] %vm157, %v475
    %s479 = scalar_lea.vmem [#allocation4], 10
    %v480 = vld [vmem:[%s479] sm:$0x3]
    %v481 = vpack.c.bf16 %v472, %v472
    %483 = vrot.lane.b32.xlu0 %v481, 32
    %v484 = vpop.permute.xlu0 %483
    %v486 = vsel %vm80, %v484, 0
    %488 = vmatprep.subr.bf16.mxu0 0
    %489 = vmatpush1.bf16.msra.mxu0 0
    %490 = vmatprep.subr.bf16.mxu0 0
    %491 = vmatpush1.bf16.msra.mxu0 0
    %492 = vmatprep.subr.bf16.mxu0 0
    %493 = vmatpush1.bf16.msra.mxu0 0
    %494 = vmatprep.subr.bf16.mxu0 0
    %495 = vmatpush1.bf16.msra.mxu0 0
    %496 = vmatprep.subr.bf16.mxu0 0
    %497 = vmatpush1.bf16.msra.mxu0 0
    %498 = vmatprep.subr.bf16.mxu0 0
    %499 = vmatpush1.bf16.msra.mxu0 0
    %500 = vmatprep.subr.bf16.mxu0 0
    %501 = vmatpush1.bf16.msra.mxu0 %v77
    %502 = vmatprep.subr.bf16.mxu0 0
    %503 = vmatpush1.bf16.msra.mxu0 %v76
    %504 = vmatprep.subr.bf16.mxu0 0
    %505 = vmatpush2.bf16.msra.mxu0 0
    %506 = vmatprep.subr.bf16.mxu0 0
    %507 = vmatpush2.bf16.msra.mxu0 0
    %508 = vmatprep.subr.bf16.mxu0 0
    %509 = vmatpush2.bf16.msra.mxu0 0
    %510 = vmatprep.subr.bf16.mxu0 0
    %511 = vmatpush2.bf16.msra.mxu0 0
    %512 = vmatprep.subr.bf16.mxu0 0
    %513 = vmatpush2.bf16.msra.mxu0 0
    %514 = vmatprep.subr.bf16.mxu0 0
    %515 = vmatpush2.bf16.msra.mxu0 0
    %516 = vmatprep.subr.bf16.mxu0 0
    %517 = vmatpush2.bf16.msra.mxu0 0
    %518 = vmatprep.subr.bf16.mxu0 0
    %519 = vmatpush2.bf16.msra.mxu0 0
    %520 = vmatprep.mubr.bf16.mxu0 0
    %521 = vmatmul.mubr.bf16.gmra.mxu0 %v486
    %v522 = vpop.f32.mrf.mxu0
    %v523 = vadd.f32 0.0, %v522
    %v524 = vpop.f32.mrf.mxu0
    %v525 = vpop.f32.mrf.mxu0
    %v526 = vpop.f32.mrf.mxu0
    %527 = vdwg.mxu0
    %v528 = vadd.f32 %v480, %v523
    %v529 = vxor.u32 %v528, 2147483648
    %v530 = vmul.f32 %v529, 1.442695
    %v531 = vpow.pop %v530
    %v532 = vadd.f32 %v531, 1.0
    %v533 = vrcp.pop %v532
    %v534 = vmul.f32 1.0, %v533
    %v535 = vtanh.pop %v528
    %v536 = vmul.f32 %v534, %v466
    %538 = vrot.lane.b32.xlu0 %v535, 64
    %v539 = vpop.permute.xlu0 %538
    %v541 = vmul.f32 %v534, %v539
    %543 = vrot.lane.b32.xlu0 %v541, 32
    %v544 = vpop.permute.xlu0 %543
    %v546 = vadd.f32 %v536, %v544
    %v547 = vtanh.pop %v546
    %549 = vrot.lane.b32.xlu0 %v547, 64
    %v550 = vpop.permute.xlu0 %549
    %v552 = vmul.f32 %v534, %v550
    %554 = vrot.lane.b32.xlu0 %v552, 32
    %v555 = vpop.permute.xlu0 %554
    %s557 = scalar_lea.vmem [#allocation9], 10
    %558 = vst.msk [vmem:[%s557] sm:$0x3] %vm157, %v555
    %s559 = scalar_lea.vmem [#allocation4], 12
    %v560 = vld [vmem:[%s559] sm:$0x3]
    %v561 = vpack.c.bf16 %v552, %v552
    %563 = vrot.lane.b32.xlu0 %v561, 32
    %v564 = vpop.permute.xlu0 %563
    %v566 = vsel %vm80, %v564, 0
    %568 = vmatprep.subr.bf16.mxu0 0
    %569 = vmatpush1.bf16.msra.mxu0 0
    %570 = vmatprep.subr.bf16.mxu0 0
    %571 = vmatpush1.bf16.msra.mxu0 0
    %572 = vmatprep.subr.bf16.mxu0 0
    %573 = vmatpush1.bf16.msra.mxu0 0
    %574 = vmatprep.subr.bf16.mxu0 0
    %575 = vmatpush1.bf16.msra.mxu0 0
    %576 = vmatprep.subr.bf16.mxu0 0
    %577 = vmatpush1.bf16.msra.mxu0 0
    %578 = vmatprep.subr.bf16.mxu0 0
    %579 = vmatpush1.bf16.msra.mxu0 0
    %580 = vmatprep.subr.bf16.mxu0 0
    %581 = vmatpush1.bf16.msra.mxu0 %v77
    %582 = vmatprep.subr.bf16.mxu0 0
    %583 = vmatpush1.bf16.msra.mxu0 %v76
    %584 = vmatprep.subr.bf16.mxu0 0
    %585 = vmatpush2.bf16.msra.mxu0 0
    %586 = vmatprep.subr.bf16.mxu0 0
    %587 = vmatpush2.bf16.msra.mxu0 0
    %588 = vmatprep.subr.bf16.mxu0 0
    %589 = vmatpush2.bf16.msra.mxu0 0
    %590 = vmatprep.subr.bf16.mxu0 0
    %591 = vmatpush2.bf16.msra.mxu0 0
    %592 = vmatprep.subr.bf16.mxu0 0
    %593 = vmatpush2.bf16.msra.mxu0 0
    %594 = vmatprep.subr.bf16.mxu0 0
    %595 = vmatpush2.bf16.msra.mxu0 0
    %596 = vmatprep.subr.bf16.mxu0 0
    %597 = vmatpush2.bf16.msra.mxu0 0
    %598 = vmatprep.subr.bf16.mxu0 0
    %599 = vmatpush2.bf16.msra.mxu0 0
    %600 = vmatprep.mubr.bf16.mxu0 0
    %601 = vmatmul.mubr.bf16.gmra.mxu0 %v566
    %v602 = vpop.f32.mrf.mxu0
    %v603 = vadd.f32 0.0, %v602
    %v604 = vpop.f32.mrf.mxu0
    %v605 = vpop.f32.mrf.mxu0
    %v606 = vpop.f32.mrf.mxu0
    %607 = vdwg.mxu0
    %v608 = vadd.f32 %v560, %v603
    %v609 = vxor.u32 %v608, 2147483648
    %v610 = vmul.f32 %v609, 1.442695
    %v611 = vpow.pop %v610
    %v612 = vadd.f32 %v611, 1.0
    %v613 = vrcp.pop %v612
    %v614 = vmul.f32 1.0, %v613
    %v615 = vtanh.pop %v608
    %v616 = vmul.f32 %v614, %v546
    %618 = vrot.lane.b32.xlu0 %v615, 64
    %v619 = vpop.permute.xlu0 %618
    %v621 = vmul.f32 %v614, %v619
    %623 = vrot.lane.b32.xlu0 %v621, 32
    %v624 = vpop.permute.xlu0 %623
    %v626 = vadd.f32 %v616, %v624
    %v627 = vtanh.pop %v626
    %629 = vrot.lane.b32.xlu0 %v627, 64
    %v630 = vpop.permute.xlu0 %629
    %v632 = vmul.f32 %v614, %v630
    %634 = vrot.lane.b32.xlu0 %v632, 32
    %v635 = vpop.permute.xlu0 %634
    %s637 = scalar_lea.vmem [#allocation9], 12
    %638 = vst.msk [vmem:[%s637] sm:$0x3] %vm157, %v635
    %s639 = scalar_lea.vmem [#allocation4], 14
    %v640 = vld [vmem:[%s639] sm:$0x3]
    %v641 = vpack.c.bf16 %v632, %v632
    %643 = vrot.lane.b32.xlu0 %v641, 32
    %v644 = vpop.permute.xlu0 %643
    %v646 = vsel %vm80, %v644, 0
    %648 = vmatprep.subr.bf16.mxu0 0
    %649 = vmatpush1.bf16.msra.mxu0 0
    %650 = vmatprep.subr.bf16.mxu0 0
    %651 = vmatpush1.bf16.msra.mxu0 0
    %652 = vmatprep.subr.bf16.mxu0 0
    %653 = vmatpush1.bf16.msra.mxu0 0
    %654 = vmatprep.subr.bf16.mxu0 0
    %655 = vmatpush1.bf16.msra.mxu0 0
    %656 = vmatprep.subr.bf16.mxu0 0
    %657 = vmatpush1.bf16.msra.mxu0 0
    %658 = vmatprep.subr.bf16.mxu0 0
    %659 = vmatpush1.bf16.msra.mxu0 0
    %660 = vmatprep.subr.bf16.mxu0 0
    %661 = vmatpush1.bf16.msra.mxu0 %v77
    %662 = vmatprep.subr.bf16.mxu0 0
    %663 = vmatpush1.bf16.msra.mxu0 %v76
    %664 = vmatprep.subr.bf16.mxu0 0
    %665 = vmatpush2.bf16.msra.mxu0 0
    %666 = vmatprep.subr.bf16.mxu0 0
    %667 = vmatpush2.bf16.msra.mxu0 0
    %668 = vmatprep.subr.bf16.mxu0 0
    %669 = vmatpush2.bf16.msra.mxu0 0
    %670 = vmatprep.subr.bf16.mxu0 0
    %671 = vmatpush2.bf16.msra.mxu0 0
    %672 = vmatprep.subr.bf16.mxu0 0
    %673 = vmatpush2.bf16.msra.mxu0 0
    %674 = vmatprep.subr.bf16.mxu0 0
    %675 = vmatpush2.bf16.msra.mxu0 0
    %676 = vmatprep.subr.bf16.mxu0 0
    %677 = vmatpush2.bf16.msra.mxu0 0
    %678 = vmatprep.subr.bf16.mxu0 0
    %679 = vmatpush2.bf16.msra.mxu0 0
    %680 = vmatprep.mubr.bf16.mxu0 0
    %681 = vmatmul.mubr.bf16.gmra.mxu0 %v646
    %v682 = vpop.f32.mrf.mxu0
    %v683 = vadd.f32 0.0, %v682
    %v684 = vpop.f32.mrf.mxu0
    %v685 = vpop.f32.mrf.mxu0
    %v686 = vpop.f32.mrf.mxu0
    %687 = vdwg.mxu0
    %v688 = vadd.f32 %v640, %v683
    %v689 = vxor.u32 %v688, 2147483648
    %v690 = vmul.f32 %v689, 1.442695
    %v691 = vpow.pop %v690
    %v692 = vadd.f32 %v691, 1.0
    %v693 = vrcp.pop %v692
    %v694 = vmul.f32 1.0, %v693
    %v695 = vtanh.pop %v688
    %v696 = vmul.f32 %v694, %v626
    %698 = vrot.lane.b32.xlu0 %v695, 64
    %v699 = vpop.permute.xlu0 %698
    %v701 = vmul.f32 %v694, %v699
    %703 = vrot.lane.b32.xlu0 %v701, 32
    %v704 = vpop.permute.xlu0 %703
    %v706 = vadd.f32 %v696, %v704
    %v707 = vtanh.pop %v706
    %709 = vrot.lane.b32.xlu0 %v707, 64
    %v710 = vpop.permute.xlu0 %709
    %v712 = vmul.f32 %v694, %v710
    %714 = vrot.lane.b32.xlu0 %v712, 32
    %v715 = vpop.permute.xlu0 %714
    %s717 = scalar_lea.vmem [#allocation9], 14
    %718 = vst.msk [vmem:[%s717] sm:$0x3] %vm157, %v715
    %719 = vst.msk [vmem:[#allocation2] sm:$0x3] %vm157, %v715
    %721 = vrot.lane.b32.xlu0 %v706, 96
    %v722 = vpop.permute.xlu0 %721
    %724 = vst.msk [vmem:[#allocation3] sm:$0x3] %vm157, %v722
    // Predicated region
    $region30: #{tpu_custom_call.1} parent=1 // pred_check
      %p725 = pneg %p51
    $region31: #{tpu_custom_call.1} parent=1 // pred_check_branch
      %727 = sbr.rel (%p725) target = $region33
    $region32: #{tpu_custom_call.1} parent=1 // pred_region
      %728 = vst.msk [vmem:[#allocation10] sm:$0x3] %vm157, %v715
      %729 = vst.msk [vmem:[#allocation12] sm:$0x3] %vm157, %v722
    $region33: #{tpu_custom_call.1} parent=1 // pred_fallthru
      _
    // Predicated region
    $region34: #{tpu_custom_call.1} parent=1 // pred_check
      _
    $region35: #{tpu_custom_call.1} parent=1 // pred_check_branch
      %731 = sbr.rel (0) target = $region37
    $region36: #{tpu_custom_call.1} parent=1 // pred_region
      %s733 = ssub.s32 256, 256
      %734 = vsyncadd [#allocation6], %s733
      %s735 = sshll.u32 [#allocation9], 4
      %s736 = int_to_ptr.vmem [resolvable:$true] %s735
      %741 = dma.vmem_to_hbm [thread:$0]  %s736, 256, %s4, [#allocation6], 32, 32, 2
    $region37: #{tpu_custom_call.1} parent=1 // pred_fallthru
      _
    // Predicated region
    $region38: #{tpu_custom_call.1} parent=1 // pred_check
      _
    $region39: #{tpu_custom_call.1} parent=1 // pred_check_branch
      %743 = sbr.rel (0) target = $region41
    $region40: #{tpu_custom_call.1} parent=1 // pred_region
      %s745 = ssub.s32 32, 32
      %746 = vsyncadd [#allocation11], %s745
      %s748 = sshll.u32 [#allocation10], 4
      %s749 = int_to_ptr.vmem [resolvable:$true] %s748
      %751 = dma.vmem_to_hbm [thread:$0]  %s749, 32, %s5, [#allocation11]
    $region41: #{tpu_custom_call.1} parent=1 // pred_fallthru
      _
    // Predicated region
    $region42: #{tpu_custom_call.1} parent=1 // pred_check
      _
    $region43: #{tpu_custom_call.1} parent=1 // pred_check_branch
      %753 = sbr.rel (0) target = $region45
    $region44: #{tpu_custom_call.1} parent=1 // pred_region
      %s755 = ssub.s32 32, 32
      %756 = vsyncadd [#allocation11], %s755
      %s758 = sshll.u32 [#allocation12], 4
      %s759 = int_to_ptr.vmem [resolvable:$true] %s758
      %761 = dma.vmem_to_hbm [thread:$0]  %s759, 32, %s6, [#allocation11]
    $region45: #{tpu_custom_call.1} parent=1 // pred_fallthru
      _
    // Predicated region
    $region46: #{tpu_custom_call.1} parent=1 // pred_check
      _
    $region47: #{tpu_custom_call.1} parent=1 // pred_check_branch
      %763 = sbr.rel (0) target = $region49
    $region48: #{tpu_custom_call.1} parent=1 // pred_region
      %764 = dma.done [#allocation6], 256
    $region49: #{tpu_custom_call.1} parent=1 // pred_fallthru
      _
    // Predicated region
    $region50: #{tpu_custom_call.1} parent=1 // pred_check
      _
    $region51: #{tpu_custom_call.1} parent=1 // pred_check_branch
      %766 = sbr.rel (0) target = $region53
    $region52: #{tpu_custom_call.1} parent=1 // pred_region
      %767 = dma.done [#allocation11], 32
    $region53: #{tpu_custom_call.1} parent=1 // pred_fallthru
      _
    // Predicated region
    $region54: #{tpu_custom_call.1} parent=1 // pred_check
      _
    $region55: #{tpu_custom_call.1} parent=1 // pred_check_branch
      %769 = sbr.rel (0) target = $region57
    $region56: #{tpu_custom_call.1} parent=1 // pred_region
      %770 = dma.done [#allocation11], 32
    $region57: #{tpu_custom_call.1} parent=1 // pred_fallthru
      _
    %771 = vsyncpa [#allocation5], 1
    %772 = vsyncpa [#allocation8], 1
    %773 = vsyncpa [#allocation6], 1
    %774 = vsyncpa [#allocation11], 1

</llo_original>
